<compile_context>
chip_gen: v7x
topology: tpu7x:2x2x1
jax: 0.10.0
libtpu: 0.0.40
codegen_flags: <defaults>
</compile_context>

<pallas_src>
import math
import functools

import jax
import jax.numpy as jnp
from jax import lax
from jax.experimental import pallas as pl
from jax.experimental.pallas import tpu as pltpu


def build_pe_table(d_model: int, max_len: int = 5000, dtype=jnp.float32):
    """Deterministic PE buffer, exactly the PyTorch __init__ formula.

    Build it in the activation dtype (e.g. bf16) to halve PE DMA bytes; the
    kernel casts to the compute dtype before the add.
    """
    position = jnp.arange(0, max_len, dtype=jnp.float32)[:, None]            # (L, 1)
    div_term = jnp.exp(
        jnp.arange(0, d_model, 2, dtype=jnp.float32)
        * (-(math.log(10000.0) / d_model))
    )                                                                         # (D/2,)
    angles = position * div_term                                              # (L, D/2)
    pe = jnp.zeros((max_len, d_model), dtype=jnp.float32)
    pe = pe.at[:, 0::2].set(jnp.sin(angles))
    pe = pe.at[:, 1::2].set(jnp.cos(angles))
    return pe.astype(dtype)


def _mix32(x):
    """murmur3 fmix32 finalizer: uint32 -> well-mixed uint32 (non-TPU fallback)."""
    x = x ^ (x >> 16)
    x = x * jnp.uint32(0x7FEB352D)
    x = x ^ (x >> 15)
    x = x * jnp.uint32(0x846CA68B)
    x = x ^ (x >> 16)
    return x


def _pe_kernel(seed_ref, x_ref, pe_ref, o_ref, *,
               keep_threshold, scale, train, compute_dtype, use_hw_prng):
    # Blocks are (tR, D): the batch dim is squeezed out by the BlockSpec, so
    # the add needs no broadcast.  compute_dtype is bf16 on v6e/v7x for bf16
    # activations, f32 otherwise.
    y = x_ref[...].astype(compute_dtype) + pe_ref[...].astype(compute_dtype)

    if train and keep_threshold > 0:
        tR, C = o_ref.shape
        if use_hw_prng:
            # Hardware PRNG: one draw per element, no per-element integer-hash
            # VALU work.  Seed per (seq-tile, batch) grid step -> independent
            # masks across tiles and batches.
            pltpu.prng_seed(seed_ref[0], pl.program_id(0), pl.program_id(1))
            rp = ((tR + 7) // 8) * 8
            cp = ((C + 127) // 128) * 128
            bits = pltpu.prng_random_bits((rp, cp))
            if bits.dtype != jnp.uint32:
                bits = pltpu.bitcast(bits, jnp.uint32)
            bits = bits[:tR, :C]
        else:
            # Counter-based fallback (interpret mode / non-TPU backends):
            # unique uint32 counter per element, mixed with seed + batch id.
            # grid = (seq_tiles, B): program_id(0) = seq tile, program_id(1) = batch.
            r = lax.broadcasted_iota(jnp.int32, (tR, C), 0).astype(jnp.uint32)
            c = lax.broadcasted_iota(jnp.int32, (tR, C), 1).astype(jnp.uint32)
            row0 = pl.program_id(0).astype(jnp.uint32) * jnp.uint32(tR)
            elem = (row0 + r) * jnp.uint32(C) + c
            key = (seed_ref[0].astype(jnp.uint32) * jnp.uint32(0x9E3779B9)
                   + pl.program_id(1).astype(jnp.uint32) * jnp.uint32(0x85EBCA6B))
            bits = _mix32(elem * jnp.uint32(0x9E3779B9) + key)

        # Integer-threshold compare: P(keep) = 1 - p, no float convert.
        keep = bits >= jnp.uint32(keep_threshold)
        y = jnp.where(keep,
                      y * jnp.asarray(scale, dtype=compute_dtype),
                      jnp.asarray(0.0, dtype=compute_dtype))

    o_ref[...] = y.astype(o_ref.dtype)


def _device_kind_lower():
    try:
        return jax.devices()[0].device_kind.lower()
    except Exception:
        return ""


def _tpu_plan():
    """Generation-aware (vmem block budget, vmem_limit_bytes, bf16_native)."""
    kind = _device_kind_lower()
    old_gen = any(t in kind for t in ("v2", "v3", "v4", "v5"))
    if old_gen:
        # v5e scoped-VMEM default is 16 MiB; no bf16 VPU -> f32 math.
        return 12 * 1024 * 1024, None, False
    # v6e/v7x: 32 MiB scoped default (v7x physical VMEM is 64 MiB, so stay well
    # below); bf16-native VALUs.
    return 24 * 1024 * 1024, 30 * 1024 * 1024, True


def _choose_row_tile(rows_total, bytes_per_row_all, budget_bytes):
    """Largest multiple-of-8 row tile keeping 2x(x + out + pe) blocks <= budget.

    No artificial row cap: bigger blocks amortize the ~0.35 us per-grid-step
    overhead (matters most at v7x's ~3.2 TB/s HBM).
    """
    if rows_total < 8:
        return rows_total                       # single block == full extent
    cap = (budget_bytes // (2 * bytes_per_row_all)) // 8 * 8
    cap = max(8, cap)
    return min(cap, (rows_total // 8) * 8)


@functools.partial(jax.jit, static_argnames=("p", "train"))
def positional_encoding(x, pe_table, seed, *, p: float = 0.1, train: bool = False):
    """x: (B, S, D); pe_table: (max_len, D) (build in x.dtype!); seed: int32[1]."""
    B, S, D = x.shape
    max_len, d_pe = pe_table.shape
    if d_pe != D:
        raise ValueError(f"d_model mismatch: x has D={D}, pe_table has {d_pe}")
    if S > max_len:
        raise ValueError(f"seq_len {S} exceeds pe_table max_len {max_len}")

    budget, vmem_limit, bf16_native = _tpu_plan()

    # Full-extent-D blocks (lane-dense whenever D % 128 == 0).  For S >= 8 the
    # FULL PE table is passed and windowed purely via the BlockSpec index_map:
    # no wrapper slice copy, and (grid order below) the resident PE block is
    # re-used across the inner batch loop.
    if S >= 8:
        pe_arr = pe_table
    else:
        pe_arr = pe_table[:S]    # tiny; needed so block == full extent when S < 8

    bytes_per_row = D * (2 * x.dtype.itemsize + pe_arr.dtype.itemsize)
    tR = _choose_row_tile(S, bytes_per_row, budget)
    nR = (S + tR - 1) // tR

    keep_threshold = 0
    scale = 1.0
    if train and p > 0.0:
        keep_threshold = min(int(round(p * 4294967296.0)), 4294967295)
        scale = 0.0 if p >= 1.0 else 1.0 / (1.0 - p)

    compute_dtype = jnp.bfloat16 if (x.dtype == jnp.bfloat16 and bf16_native) else jnp.float32
    use_hw_prng = _device_kind_lower() != "" and jax.devices()[0].platform == "tpu"

    kernel = functools.partial(
        _pe_kernel,
        keep_threshold=keep_threshold, scale=scale, train=train,
        compute_dtype=compute_dtype, use_hw_prng=use_hw_prng)

    out = pl.pallas_call(
        kernel,
        out_shape=jax.ShapeDtypeStruct((B, S, D), x.dtype),
        grid_spec=pltpu.PrefetchScalarGridSpec(
            num_scalar_prefetch=1,                           # seed lands in SMEM
            grid=(nR, B),                                    # seq tiles outer, batch inner
            in_specs=[
                # batch dim squeezed out of the kernel view
                pl.BlockSpec((None, tR, D), lambda s, b, _seed: (b, s, 0)),
                # PE index_map independent of the inner batch axis -> Pallas
                # skips the PE DMA when the block index is unchanged between
                # consecutive grid steps (fetched once per seq tile, not B x).
                pl.BlockSpec((tR, D), lambda s, b, _seed: (s, 0)),
            ],
            out_specs=pl.BlockSpec((None, tR, D), lambda s, b, _seed: (b, s, 0)),
        ),
        compiler_params=pltpu.CompilerParams(
            dimension_semantics=("parallel", "parallel"),
            vmem_limit_bytes=vmem_limit,
        ),
    )(seed, x, pe_arr)

    return out


if __name__ == "__main__":
    B, S, D = 2, 8, 32           # batch=2, seq=8, d_model=32 (even, per formula)
    MAX_LEN = 128                # small max_len for the demo (module default 5000)
    P_DROP = 0.1

    key = jax.random.PRNGKey(0)
    x = jax.random.normal(key, (B, S, D), dtype=jnp.float32)
    pe_table = build_pe_table(D, MAX_LEN, dtype=jnp.float32)
    seed = jnp.array([0], dtype=jnp.int32)

    # Eval mode (dropout == identity): must match x + pe[:S] exactly.
    out_eval = positional_encoding(x, pe_table, seed, p=P_DROP, train=False)
    out_eval = jax.block_until_ready(out_eval)
    ref = x + pe_table[None, :S, :]
    assert out_eval.shape == (B, S, D) and out_eval.dtype == x.dtype
    assert jnp.allclose(out_eval, ref, atol=1e-6, rtol=1e-6)

    # Training mode: hardware-PRNG dropout.  Kept elements must equal
    # ref / (1 - p); dropped elements are exactly zero.
    out_train = positional_encoding(x, pe_table, seed, p=P_DROP, train=True)
    out_train = jax.block_until_ready(out_train)
    kept = out_train != 0.0
    scaled_ref = ref / (1.0 - P_DROP)
    assert jnp.allclose(jnp.where(kept, out_train, scaled_ref), scaled_ref,
                        atol=1e-5, rtol=1e-5)

    # bf16 activations with PE built in the activation dtype (halves PE DMA);
    # the kernel adds in bf16 on v6e/v7x and upcasts to f32 on older chips.
    xb = x.astype(jnp.bfloat16)
    pe_b = build_pe_table(D, MAX_LEN, dtype=jnp.bfloat16)
    out_b = positional_encoding(xb, pe_b, seed, p=P_DROP, train=False)
    out_b = jax.block_until_ready(out_b)
    assert out_b.shape == (B, S, D) and out_b.dtype == jnp.bfloat16
    assert jnp.allclose(out_b.astype(jnp.float32), ref, atol=0.1, rtol=0.05)

    print("KERNEL_OK")
</pallas_src>

<mosaic_0001>
module attributes {stable_mosaic.version = 11 : i64} {
  func.func @_pe_kernel(%arg0: i32, %arg1: i32, %arg2: memref<1xi32, #tpu.memory_space<smem>>, %arg3: memref<1x8x32xf32, #tpu.memory_space<vmem>>, %arg4: memref<8x32xf32, #tpu.memory_space<vmem>>, %arg5: memref<1x8x32xf32, #tpu.memory_space<vmem>>) attributes {dimension_semantics = [#tpu.dimension_semantics<parallel>, #tpu.dimension_semantics<parallel>], iteration_bounds = array<i64: 1, 2>, scalar_prefetch = 1 : i64, scratch_operands = 0 : i64, tpu.core_type = #tpu.core_type<tc>, window_params = [{transform_indices = @transform_0, window_bounds = array<i64: 1, 8, 32>}, {transform_indices = @transform_1, window_bounds = array<i64: 8, 32>}, {transform_indices = @transform_2, window_bounds = array<i64: 1, 8, 32>}]} {
    %c0 = arith.constant 0 : index
    %c0_0 = arith.constant 0 : index
    %c0_1 = arith.constant 0 : index
    %0 = vector.load %arg3[%c0, %c0_0, %c0_1] : memref<1x8x32xf32, #tpu.memory_space<vmem>>, vector<1x8x32xf32>
    %1 = vector.shape_cast %0 : vector<1x8x32xf32> to vector<8x32xf32>
    %c0_2 = arith.constant 0 : index
    %c0_3 = arith.constant 0 : index
    %2 = vector.load %arg4[%c0_2, %c0_3] : memref<8x32xf32, #tpu.memory_space<vmem>>, vector<8x32xf32>
    %3 = arith.addf %1, %2 : vector<8x32xf32>
    %c0_4 = arith.constant 0 : index
    %c0_5 = arith.constant 0 : index
    %c0_6 = arith.constant 0 : index
    %4 = vector.load %arg5[%c0_4, %c0_5, %c0_6] : memref<1x8x32xf32, #tpu.memory_space<vmem>>, vector<1x8x32xf32>
    %5 = vector.shape_cast %4 : vector<1x8x32xf32> to vector<8x32xf32>
    %6 = vector.shape_cast %3 : vector<8x32xf32> to vector<1x8x32xf32>
    tpu.vector_store %arg5[%c0_4, %c0_5, %c0_6], %6 {strides = array<i32>} : memref<1x8x32xf32, #tpu.memory_space<vmem>>, vector<1x8x32xf32>,
    return
  }
  func.func @transform_0(%arg0: i32, %arg1: i32, %arg2: memref<1xi32, #tpu.memory_space<smem>>) -> (i32, i32, i32) {
    %c0_i32 = arith.constant 0 : i32
    %c0_i32_0 = arith.constant 0 : i32
    return %arg1, %arg0, %c0_i32 : i32, i32, i32
  }
  func.func @transform_1(%arg0: i32, %arg1: i32, %arg2: memref<1xi32, #tpu.memory_space<smem>>) -> (i32, i32) {
    %c0_i32 = arith.constant 0 : i32
    %c0_i32_0 = arith.constant 0 : i32
    return %arg0, %c0_i32 : i32, i32
  }
  func.func @transform_2(%arg0: i32, %arg1: i32, %arg2: memref<1xi32, #tpu.memory_space<smem>>) -> (i32, i32, i32) {
    %c0_i32 = arith.constant 0 : i32
    %c0_i32_0 = arith.constant 0 : i32
    return %arg1, %arg0, %c0_i32 : i32, i32, i32
  }
}

</mosaic_0001>

<llo_original>
// kernel: positional_encoding.1
$region0: #{positional_encoding.1}
  #allocation0 [shape = 'u32[]', space=smem, size = 0x4, offset = 0x4, fixed_abs, tag = 'smem constant byte address 0x4 - core index']
  #allocation1 [shape = 'u32[144,128]{1,0:T(1,128)}', space=vmem, size = 0x12000, scoped, tag = 'internal scratch']
  #allocation2 [shape = 's32[1]{0}', space=sflag, size = 0x4, scoped, tag = 'scoped memory for positional_encoding.1']
  #allocation3 [shape = 's32[1]{0:T(128)S(6)}', space=smem, size = 0x200, scoped, tag = 'prefetched SMEM operand 0']
  %s0 = inlined_call_operand.<no memory space> [shape: s32[1], index: 0, kind: input, shape index: {}]
  %s1 = inlined_call_operand.vmem [shape: f32[2,8,32], index: 1, kind: input, shape index: {}]
  %s2 = inlined_call_operand.vmem [shape: f32[128,32], index: 2, kind: input, shape index: {}]
  %s3 = inlined_call_operand.hbm [shape: f32[2,8,32], index: 3, kind: output, shape index: {}]
  %s4 = sld [smem:[#allocation0]]
  $region41: #{positional_encoding.1} parent=0
    _
  %s6 = ssub.s32 1, %s4
  %s7 = scalar_select 0, %s6, %s4
  %8 = sst [smem:[#allocation3]] %s0
  $region1: #{positional_encoding.1} parent=0
    #allocation4 [shape = 'u8[8192]{0}', space=vmem, size = 0x2000, scoped, tag = 'output window, operand 0']
    #allocation5 [shape = 's32[2]{0}', space=sflag, size = 0x8, scoped, tag = 'scoped memory for positional_encoding.1']
    %9 = vsyncpa [#allocation5], 0
    %s10 = scalar_lea.sflag [#allocation5], 1
    %11 = vsyncpa %s10, 0
    loop: start=0, step=1, limit=4
    $region2: #{positional_encoding.1} parent=1 // loop_pre_header
      _
    $region3: #{positional_encoding.1} parent=1 // loop_header
      %s13 = sphi 0, %s17
      %p14 = scmp.ge.s32.totalorder %s13, 4
      %s20 = sphi 0, %s32
      %s21 = sphi 0, %s28
      %s22 = sphi 0, %s20
      %s23 = sphi 0, %s21
      %s24 = sphi 0, %s22
      %s25 = sphi 0, %s23
      %s37 = sphi 0, %s39
      %s40 = sphi 0, %s37
      %s41 = sphi 0, %s40
      %s57 = sphi 0, %s41
      %s63 = sphi 0, %s65
      %s66 = sphi 0, %s63
      %s67 = sphi 0, %s66
      %s83 = sphi 0, %s67
      %s91 = sphi 0, %s93
      %s94 = sphi 0, %s91
      %s95 = sphi 0, %s94
      %s111 = sphi 0, %s95
    $region4: #{positional_encoding.1} parent=1 // loop_header_branch
      %16 = sbr.rel (%p14) target = $region8
    $region5: #{positional_encoding.1} parent=1 // loop_body
      %s18 = ssub.s32 %s13, 1
      %s19 = ssub.s32 %s13, 2
      %s26 = sadd.s32 1, %s21
      %p27 = scmp.ge.s32.totalorder %s26, 2
      %s28 = scalar_select %p27, 0, %s26
      %s29 = sadd.s32 1, %s20
      %s30 = scalar_select %p27, %s29, %s20
      %p31 = scmp.ge.s32.totalorder %s30, 1
      %s32 = scalar_select %p31, 0, %s30
      %s33 = ssub.s32 %s21, %s28
      %s34 = ssub.s32 %s20, %s32
      %s35 = sor.u32 %s33, %s34
      %p36 = scmp.eq.s32.totalorder %s35, 0
      %s38 = sadd.s32 %s37, 1
      %s39 = scalar_select %p36, %s37, %s38
      %p42 = pneg %p36
      %p43 = scmp.eq.s32.totalorder %s13, 1
      %p44 = por %p42, %p43
      %p45 = scmp.ne.s32.totalorder %s37, %s40
      %p46 = scmp.eq.s32.totalorder %s13, 0
      %p47 = por %p45, %p46
      %p48 = scmp.ne.s32.totalorder %s37, %s40
      %p49 = scmp.eq.s32.totalorder %s18, 1
      %p50 = por %p48, %p49
      %p51 = scmp.ne.s32.totalorder %s40, %s41
      %p52 = scmp.eq.s32.totalorder %s18, 0
      %p53 = por %p51, %p52
      %p54 = scmp.ne.s32.totalorder %s40, %s41
      %p55 = scmp.eq.s32.totalorder %s19, 1
      %p56 = por %p54, %p55
      %p58 = scmp.ne.s32.totalorder %s41, %s57
      %p59 = scmp.eq.s32.totalorder %s19, 0
      %p60 = por %p58, %p59
      %s61 = ssub.s32 %s20, %s32
      %p62 = scmp.eq.s32.totalorder %s61, 0
      %s64 = sadd.s32 %s63, 1
      %s65 = scalar_select %p62, %s63, %s64
      %p68 = pneg %p62
      %p69 = scmp.eq.s32.totalorder %s13, 1
      %p70 = por %p68, %p69
      %p71 = scmp.ne.s32.totalorder %s63, %s66
      %p72 = scmp.eq.s32.totalorder %s13, 0
      %p73 = por %p71, %p72
      %p74 = scmp.ne.s32.totalorder %s63, %s66
      %p75 = scmp.eq.s32.totalorder %s18, 1
      %p76 = por %p74, %p75
      %p77 = scmp.ne.s32.totalorder %s66, %s67
      %p78 = scmp.eq.s32.totalorder %s18, 0
      %p79 = por %p77, %p78
      %p80 = scmp.ne.s32.totalorder %s66, %s67
      %p81 = scmp.eq.s32.totalorder %s19, 1
      %p82 = por %p80, %p81
      %p84 = scmp.ne.s32.totalorder %s67, %s83
      %p85 = scmp.eq.s32.totalorder %s19, 0
      %p86 = por %p84, %p85
      %s87 = ssub.s32 %s21, %s28
      %s88 = ssub.s32 %s20, %s32
      %s89 = sor.u32 %s87, %s88
      %p90 = scmp.eq.s32.totalorder %s89, 0
      %s92 = sadd.s32 %s91, 1
      %s93 = scalar_select %p90, %s91, %s92
      %p96 = pneg %p90
      %p97 = scmp.eq.s32.totalorder %s13, 1
      %p98 = por %p96, %p97
      %p99 = scmp.ne.s32.totalorder %s91, %s94
      %p100 = scmp.eq.s32.totalorder %s13, 0
      %p101 = por %p99, %p100
      %p102 = scmp.ne.s32.totalorder %s91, %s94
      %p103 = scmp.eq.s32.totalorder %s18, 1
      %p104 = por %p102, %p103
      %p105 = scmp.ne.s32.totalorder %s94, %s95
      %p106 = scmp.eq.s32.totalorder %s18, 0
      %p107 = por %p105, %p106
      %p108 = scmp.ne.s32.totalorder %s94, %s95
      %p109 = scmp.eq.s32.totalorder %s19, 1
      %p110 = por %p108, %p109
      %p112 = scmp.ne.s32.totalorder %s95, %s111
      %p113 = scmp.eq.s32.totalorder %s19, 0
      %p114 = por %p112, %p113
      %p115 = scmp.le.s32.totalorder 1, %s13
      %p116 = scmp.lt.s32.totalorder %s13, 3
      %p117 = pnand %p115, %p116
      %p118 = pneg %p117
      // Predicated region
      $region9: #{positional_encoding.1} parent=5 // pred_check
        _
      $region10: #{positional_encoding.1} parent=5 // pred_check_branch
        %120 = sbr.rel (%p117) target = $region12
      $region11: #{positional_encoding.1} parent=5 // pred_region
        %s121 = ssub.s32 %s13, 1
        // Predicated region
        $region13: #{positional_encoding.1} parent=11 // pred_check
          %p122 = pneg %p79
        $region14: #{positional_encoding.1} parent=11 // pred_check_branch
          %124 = sbr.rel (%p122) target = $region16
        $region15: #{positional_encoding.1} parent=11 // pred_region
          %p125 = scmp.lt.s32.totalorder %s22, 15
          %s126 = scalar_select %p125, %s22, 15
          %s127 = smul.addr %s126, 8
          %s128 = scalar_lea.vmem %s2, %s127
        $region16: #{positional_encoding.1} parent=11 // pred_fallthru
          _
      $region12: #{positional_encoding.1} parent=5 // pred_fallthru
        _
      %p129 = scmp.lt.s32.totalorder %s13, 2
      // Predicated region
      $region17: #{positional_encoding.1} parent=5 // pred_check
        %p130 = pneg %p129
      $region18: #{positional_encoding.1} parent=5 // pred_check_branch
        %132 = sbr.rel (%p130) target = $region20
      $region19: #{positional_encoding.1} parent=5 // pred_region
        // Predicated region
        $region21: #{positional_encoding.1} parent=19 // pred_check
          %p133 = pneg %p47
        $region22: #{positional_encoding.1} parent=19 // pred_check_branch
          %135 = sbr.rel (%p133) target = $region24
        $region23: #{positional_encoding.1} parent=19 // pred_region
          %p136 = scmp.lt.s32.totalorder %s21, 1
          %s137 = scalar_select %p136, %s21, 1
          %p138 = scmp.lt.s32.totalorder %s20, 0
          %s139 = scalar_select %p138, %s20, 0
          %s140 = sadd.s32 %s139, %s137
          %s141 = smul.addr %s140, 8
          %s142 = scalar_lea.vmem %s1, %s141
        $region24: #{positional_encoding.1} parent=19 // pred_fallthru
          _
      $region20: #{positional_encoding.1} parent=5 // pred_fallthru
        _
      %p143 = scmp.le.s32.totalorder 1, %s13
      %p144 = scmp.lt.s32.totalorder %s13, 3
      %p145 = pnand %p143, %p144
      %p146 = pneg %p145
      // Predicated region
      $region25: #{positional_encoding.1} parent=5 // pred_check
        _
      $region26: #{positional_encoding.1} parent=5 // pred_check_branch
        %148 = sbr.rel (%p145) target = $region28
      $region27: #{positional_encoding.1} parent=5 // pred_region
        %s149 = ssub.s32 %s13, 1
        %p150 = scmp.lt.s32.totalorder %s23, 1
        %s151 = scalar_select %p150, %s23, 1
        %p152 = scmp.lt.s32.totalorder %s22, 0
        %s153 = scalar_select %p152, %s22, 0
        %s154 = sadd.s32 %s153, %s151
        %s155 = smul.addr %s154, 8
        %s156 = scalar_lea.vmem %s1, %s155
        %p157 = pneg %p53
        %p158 = pneg %p50
        %p159 = scmp.lt.s32.totalorder %s22, 15
        %s160 = scalar_select %p159, %s22, 15
        %s161 = smul.addr %s160, 8
        %s162 = scalar_lea.vmem %s2, %s161
        %p163 = pneg %p79
        %p164 = pneg %p76
        %p165 = pneg %p107
        %p166 = pneg %p104
        %s167 = sand.u32 %s94, 1
        %s168 = scalar_lea.sflag [#allocation5], %s167
        %s169 = sand.u32 %s94, 1
        %s170 = smul.addr %s169, 8
        %s171 = scalar_lea.vmem [#allocation4], %s170
        %p172 = scmp.lt.s32.totalorder %s23, 1
        %s173 = scalar_select %p172, %s23, 1
        %p174 = scmp.lt.s32.totalorder %s22, 0
        %s175 = scalar_select %p174, %s22, 0
        %s176 = sadd.s32 %s175, %s173
        %s177 = smul.addr %s176, 8
        %s178 = scalar_lea.vmem %s1, %s177
        %p179 = scmp.lt.s32.totalorder %s22, 15
        %s180 = scalar_select %p179, %s22, 15
        %s181 = smul.addr %s180, 8
        %s182 = scalar_lea.vmem %s2, %s181
        %v183 = vld [vmem:[%s178] sm:$0xff]
        %v184 = vld [vmem:[%s182] sm:$0xff]
        %v185 = vadd.f32 %v183, %v184
        %vm186 = vcmask 261120
        %187 = vst.msk [vmem:[%s171] sm:$0xff] %vm186, %v185
        %s188 = sand.u32 %s94, 1
        %s189 = scalar_lea.sflag [#allocation5], %s188
        %s190 = sand.u32 %s94, 1
        %s191 = smul.addr %s190, 8
        %s192 = scalar_lea.vmem [#allocation4], %s191
        // Predicated region
        $region29: #{positional_encoding.1} parent=27 // pred_check
          %p193 = pneg %p104
        $region30: #{positional_encoding.1} parent=27 // pred_check_branch
          %195 = sbr.rel (%p193) target = $region32
        $region31: #{positional_encoding.1} parent=27 // pred_region
          %s197 = ssub.s32 128, 128
          %198 = vsyncadd %s189, %s197
          %s199 = sadd.s32 %s22, %s23
          %s200 = smul.addr %s199, 128
          %s201 = scalar_lea.hbm %s3, %s200
          %s203 = sshll.u32 %s192, 4
          %s204 = int_to_ptr.vmem [resolvable:$true] %s203
          %206 = dma.vmem_to_hbm [thread:$0]  %s204, 128, %s201, %s189
        $region32: #{positional_encoding.1} parent=27 // pred_fallthru
          _
      $region28: #{positional_encoding.1} parent=5 // pred_fallthru
        _
      %p207 = scmp.le.s32.totalorder 2, %s13
      // Predicated region
      $region33: #{positional_encoding.1} parent=5 // pred_check
        %p208 = pneg %p207
      $region34: #{positional_encoding.1} parent=5 // pred_check_branch
        %210 = sbr.rel (%p208) target = $region36
      $region35: #{positional_encoding.1} parent=5 // pred_region
        %s211 = ssub.s32 %s13, 2
        // Predicated region
        $region37: #{positional_encoding.1} parent=35 // pred_check
          %p212 = pneg %p110
        $region38: #{positional_encoding.1} parent=35 // pred_check_branch
          %214 = sbr.rel (%p212) target = $region40
        $region39: #{positional_encoding.1} parent=35 // pred_region
          %s215 = sand.u32 %s95, 1
          %s216 = scalar_lea.sflag [#allocation5], %s215
          %s217 = sand.u32 %s95, 1
          %s218 = smul.addr %s217, 8
          %s219 = scalar_lea.vmem [#allocation4], %s218
          %220 = dma.done %s216, 128
        $region40: #{positional_encoding.1} parent=35 // pred_fallthru
          _
      $region36: #{positional_encoding.1} parent=5 // pred_fallthru
        _
    $region6: #{positional_encoding.1} parent=1 // loop_footer
      %s17 = sadd.s32 1, %s13
    $region7: #{positional_encoding.1} parent=1 // loop_footer_branch
      %12 = sbr.rel target = $region3
    $region8: #{positional_encoding.1} parent=1 // loop_exit
      _
    %221 = vsyncpa [#allocation5], 1
    %s222 = scalar_lea.sflag [#allocation5], 1
    %223 = vsyncpa %s222, 1

</llo_original>
